<compile_context>
chip_gen: v7x
topology: tpu7x:2x2x1
jax: 0.10.0
libtpu: 0.0.40
codegen_flags: <defaults>
</compile_context>

<pallas_src>
import jax
import jax.numpy as jnp
from jax.experimental import pallas as pl
from jax.experimental.pallas import tpu as pltpu

H1, H2, H3, OUT = 128, 64, 32, 2


def _round_up(n, m):
    return ((n + m - 1) // m) * m


def _tpu_generation_hints():
    """Return (tile_b cap, vmem_limit ceiling, #TensorCores/chip) with safe fallbacks."""
    # Conservative default = v7x-like (smallest VMEM, 2 TCs).
    tile_b_max, vmem_ceiling, num_tc = 8192, 40 * 1024 * 1024, 2
    try:
        kind = jax.devices()[0].device_kind.lower()
    except Exception:
        kind = ""
    if "v7" in kind:
        tile_b_max, vmem_ceiling, num_tc = 8192, 40 * 1024 * 1024, 2
    elif any(g in kind for g in ("v6", "v5", "v4", "v3", "v2")):
        tile_b_max, vmem_ceiling, num_tc = 16384, 96 * 1024 * 1024, 1
    return tile_b_max, vmem_ceiling, num_tc


def _mlp_kernel(x_ref, w1_ref, b1_ref, w2_ref, b2_ref, w3_ref, b3_ref,
                w4_ref, b4_ref, o_ref):
    # In-kernel cast to bf16 (VPU has slack; avoids an extra HBM pass vs. casting
    # in the wrapper).
    xb = x_ref[...].astype(jnp.bfloat16)
    # All matmuls accumulate f32 on the MXU; bias-add / ReLU stay f32 on the VPU
    # (v5e has no bf16 VALU).  Dropout = identity (eval).
    h = jnp.dot(xb, w1_ref[...], preferred_element_type=jnp.float32)
    h = jnp.maximum(h + b1_ref[...], 0.0)
    h = jnp.dot(h.astype(jnp.bfloat16), w2_ref[...], preferred_element_type=jnp.float32)
    h = jnp.maximum(h + b2_ref[...], 0.0)
    h = jnp.dot(h.astype(jnp.bfloat16), w3_ref[...], preferred_element_type=jnp.float32)
    h = jnp.maximum(h + b3_ref[...], 0.0)
    # TODO(synk): if bundle counts show the vex slot (vmatmul) binding, move this
    # 32->2 head off the MXU (VPU mul + XLU cross-lane reduce).
    out = jnp.dot(h.astype(jnp.bfloat16), w4_ref[...], preferred_element_type=jnp.float32)
    o_ref[...] = (out + b4_ref[...]).astype(o_ref.dtype)


def doa_predictor_forward(x, params):
    """Fused forward pass of DoAPredictor.

    x: [B, input_dim] (any float dtype; cast to bf16 inside the kernel).
    params: (w1,b1,...,w4,b4); weights bf16 stored as (in_features, out_features),
            biases f32 stored as (1, out_features).
    """
    (w1, b1, w2, b2, w3, b3, w4, b4) = params
    B, input_dim = x.shape
    x_itemsize = x.dtype.itemsize

    tile_b_max, vmem_ceiling, num_tc = _tpu_generation_hints()

    # ---- batch-tile sizing --------------------------------------------------
    # Per-row VMEM cost: double-buffered x tile + double-buffered out tile +
    # f32 and bf16 inter-layer activations.
    bytes_per_row = (2 * input_dim * x_itemsize          # x, double buffered
                     + 2 * OUT * 4                       # out, double buffered
                     + (H1 + H2 + H3) * (4 + 2))         # f32 + bf16 activations
    w_bytes = 2 * (input_dim * H1 + H1 * H2 + H2 * H3 + H3 * OUT)   # bf16 weights
    b_bytes = 4 * (H1 + H2 + H3 + OUT)                              # f32 biases
    fixed_bytes = 2 * (w_bytes + b_bytes)                # weights/biases (+ slack)

    # Keep the working set under ~2/3 of the per-generation ceiling (headroom for
    # compiler-internal scratch and spills).
    budget_rows = max(16, ((vmem_ceiling * 2 // 3) - fixed_bytes) // bytes_per_row)
    tile_cap = max(16, min(tile_b_max, (budget_rows // 16) * 16))

    # On 2-TC chips (v7x) force >= 4 grid steps so the "parallel" batch axis can
    # shard across both TensorCores.  16-row granule (sublane / bf16 packing).
    min_steps = 4 if num_tc >= 2 else 1
    tile_b = _round_up(max(pl.cdiv(B, min_steps), 16), 16)
    tile_b = max(16, min(tile_b, tile_cap))
    grid = (pl.cdiv(B, tile_b),)

    # ---- specs ---------------------------------------------------------------
    # Streamed blocks over the batch; weights/biases pinned with constant index_maps.
    x_spec = pl.BlockSpec((tile_b, input_dim), lambda i: (i, 0))
    o_spec = pl.BlockSpec((tile_b, OUT), lambda i: (i, 0))

    def const_spec(arr):
        return pl.BlockSpec(arr.shape, lambda i: (0, 0))

    in_specs = [x_spec,
                const_spec(w1), const_spec(b1),
                const_spec(w2), const_spec(b2),
                const_spec(w3), const_spec(b3),
                const_spec(w4), const_spec(b4)]

    # ---- VMEM limit / cost hint ----------------------------------------------
    need = (2 * tile_b * input_dim * x_itemsize
            + 2 * tile_b * OUT * 4
            + tile_b * (H1 + H2 + H3) * (4 + 2)
            + fixed_bytes)
    vmem_limit = int(min(max(need * 3 // 2, 16 * 1024 * 1024), vmem_ceiling))

    flops = 2 * B * (input_dim * H1 + H1 * H2 + H2 * H3 + H3 * OUT)
    bytes_accessed = B * input_dim * x_itemsize + (w_bytes + b_bytes) + B * OUT * 4

    return pl.pallas_call(
        _mlp_kernel,
        out_shape=jax.ShapeDtypeStruct((B, OUT), jnp.float32),
        grid=grid,
        in_specs=in_specs,
        out_specs=o_spec,
        compiler_params=pltpu.CompilerParams(
            dimension_semantics=("parallel",),   # megacore sharding on v7x; no-op on 1-TC chips
            vmem_limit_bytes=vmem_limit,
        ),
        cost_estimate=pl.CostEstimate(
            flops=flops, transcendentals=0, bytes_accessed=bytes_accessed),
    )(x, w1, b1, w2, b2, w3, b3, w4, b4)


def init_params(key, input_dim):
    """Deterministic init. Weights bf16 (in_features, out_features), biases f32 (1, out)."""
    dims = [(input_dim, H1), (H1, H2), (H2, H3), (H3, OUT)]
    params = []
    for i, (din, dout) in enumerate(dims):
        kw, kb = jax.random.split(jax.random.fold_in(key, i))
        bound = 1.0 / jnp.sqrt(jnp.float32(din))
        w = jax.random.uniform(kw, (din, dout), jnp.float32, -bound, bound)
        b = jax.random.uniform(kb, (1, dout), jnp.float32, -bound, bound)
        params += [w.astype(jnp.bfloat16), b]
    return tuple(params)


def _reference_forward(x, params):
    """Pure-JAX reference with the same bf16-operand / f32-accumulate semantics."""
    (w1, b1, w2, b2, w3, b3, w4, b4) = params
    xb = x.astype(jnp.bfloat16)
    h = jnp.maximum(jnp.dot(xb, w1, preferred_element_type=jnp.float32) + b1, 0.0)
    h = jnp.maximum(jnp.dot(h.astype(jnp.bfloat16), w2,
                            preferred_element_type=jnp.float32) + b2, 0.0)
    h = jnp.maximum(jnp.dot(h.astype(jnp.bfloat16), w3,
                            preferred_element_type=jnp.float32) + b3, 0.0)
    return jnp.dot(h.astype(jnp.bfloat16), w4,
                   preferred_element_type=jnp.float32) + b4


if __name__ == "__main__":
    key = jax.random.PRNGKey(0)
    B, input_dim = 8, 16
    kx, kp = jax.random.split(key)
    x = jax.random.normal(kx, (B, input_dim), jnp.float32)
    params = init_params(kp, input_dim)

    out = doa_predictor_forward(x, params)
    out = jax.block_until_ready(out)

    ref = _reference_forward(x, params)
    assert out.shape == (B, OUT)
    assert jnp.allclose(out, ref, atol=1e-2, rtol=1e-2), (
        f"max abs err {jnp.max(jnp.abs(out - ref))}")
    print("KERNEL_OK")
</pallas_src>

<mosaic_0001>
module attributes {stable_mosaic.version = 11 : i64} {
  func.func @_mlp_kernel(%arg0: i32, %arg1: memref<16x16xf32, #tpu.memory_space<vmem>>, %arg2: memref<16x128xbf16, #tpu.memory_space<vmem>>, %arg3: memref<1x128xf32, #tpu.memory_space<vmem>>, %arg4: memref<128x64xbf16, #tpu.memory_space<vmem>>, %arg5: memref<1x64xf32, #tpu.memory_space<vmem>>, %arg6: memref<64x32xbf16, #tpu.memory_space<vmem>>, %arg7: memref<1x32xf32, #tpu.memory_space<vmem>>, %arg8: memref<32x2xbf16, #tpu.memory_space<vmem>>, %arg9: memref<1x2xf32, #tpu.memory_space<vmem>>, %arg10: memref<16x2xf32, #tpu.memory_space<vmem>>) attributes {dimension_semantics = [#tpu.dimension_semantics<parallel>], iteration_bounds = array<i64: 1>, scalar_prefetch = 0 : i64, scratch_operands = 0 : i64, tpu.core_type = #tpu.core_type<tc>, window_params = [{transform_indices = @transform_0, window_bounds = array<i64: 16, 16>}, {pipeline_mode = #tpu.pipeline_mode<synchronous>, transform_indices = @transform_1, window_bounds = array<i64: 16, 128>}, {pipeline_mode = #tpu.pipeline_mode<synchronous>, transform_indices = @transform_2, window_bounds = array<i64: 1, 128>}, {pipeline_mode = #tpu.pipeline_mode<synchronous>, transform_indices = @transform_3, window_bounds = array<i64: 128, 64>}, {pipeline_mode = #tpu.pipeline_mode<synchronous>, transform_indices = @transform_4, window_bounds = array<i64: 1, 64>}, {pipeline_mode = #tpu.pipeline_mode<synchronous>, transform_indices = @transform_5, window_bounds = array<i64: 64, 32>}, {pipeline_mode = #tpu.pipeline_mode<synchronous>, transform_indices = @transform_6, window_bounds = array<i64: 1, 32>}, {pipeline_mode = #tpu.pipeline_mode<synchronous>, transform_indices = @transform_7, window_bounds = array<i64: 32, 2>}, {pipeline_mode = #tpu.pipeline_mode<synchronous>, transform_indices = @transform_8, window_bounds = array<i64: 1, 2>}, {transform_indices = @transform_9, window_bounds = array<i64: 16, 2>}]} {
    %c0 = arith.constant 0 : index
    %c0_0 = arith.constant 0 : index
    %0 = vector.load %arg1[%c0, %c0_0] : memref<16x16xf32, #tpu.memory_space<vmem>>, vector<16x16xf32>
    %1 = arith.truncf %0 : vector<16x16xf32> to vector<16x16xbf16>
    %c0_1 = arith.constant 0 : index
    %c0_2 = arith.constant 0 : index
    %2 = vector.load %arg2[%c0_1, %c0_2] : memref<16x128xbf16, #tpu.memory_space<vmem>>, vector<16x128xbf16>
    %cst = arith.constant dense<0.000000e+00> : vector<16x128xf32>
    %3 = tpu.matmul %1, %2, %cst {dimension_numbers = #tpu.dot_dimension_numbers<[1], [0], [0], [1], [0, 0, 1, 1], [], []>} : vector<16x16xbf16>, vector<16x128xbf16>, vector<16x128xf32> -> vector<16x128xf32>
    %c0_3 = arith.constant 0 : index
    %c0_4 = arith.constant 0 : index
    %4 = vector.load %arg3[%c0_3, %c0_4] : memref<1x128xf32, #tpu.memory_space<vmem>>, vector<1x128xf32>
    %5 = vector.broadcast %4 : vector<1x128xf32> to vector<16x128xf32>
    %6 = arith.addf %3, %5 : vector<16x128xf32>
    %cst_5 = arith.constant 0.000000e+00 : f32
    %7 = vector.broadcast %cst_5 : f32 to vector<16x128xf32>
    %8 = arith.maximumf %6, %7 : vector<16x128xf32>
    %9 = arith.truncf %8 : vector<16x128xf32> to vector<16x128xbf16>
    %c0_6 = arith.constant 0 : index
    %c0_7 = arith.constant 0 : index
    %10 = vector.load %arg4[%c0_6, %c0_7] : memref<128x64xbf16, #tpu.memory_space<vmem>>, vector<128x64xbf16>
    %cst_8 = arith.constant dense<0.000000e+00> : vector<16x64xf32>
    %11 = tpu.matmul %9, %10, %cst_8 {dimension_numbers = #tpu.dot_dimension_numbers<[1], [0], [0], [1], [0, 0, 1, 1], [], []>} : vector<16x128xbf16>, vector<128x64xbf16>, vector<16x64xf32> -> vector<16x64xf32>
    %c0_9 = arith.constant 0 : index
    %c0_10 = arith.constant 0 : index
    %12 = vector.load %arg5[%c0_9, %c0_10] : memref<1x64xf32, #tpu.memory_space<vmem>>, vector<1x64xf32>
    %13 = vector.broadcast %12 : vector<1x64xf32> to vector<16x64xf32>
    %14 = arith.addf %11, %13 : vector<16x64xf32>
    %cst_11 = arith.constant 0.000000e+00 : f32
    %15 = vector.broadcast %cst_11 : f32 to vector<16x64xf32>
    %16 = arith.maximumf %14, %15 : vector<16x64xf32>
    %17 = arith.truncf %16 : vector<16x64xf32> to vector<16x64xbf16>
    %c0_12 = arith.constant 0 : index
    %c0_13 = arith.constant 0 : index
    %18 = vector.load %arg6[%c0_12, %c0_13] : memref<64x32xbf16, #tpu.memory_space<vmem>>, vector<64x32xbf16>
    %cst_14 = arith.constant dense<0.000000e+00> : vector<16x32xf32>
    %19 = tpu.matmul %17, %18, %cst_14 {dimension_numbers = #tpu.dot_dimension_numbers<[1], [0], [0], [1], [0, 0, 1, 1], [], []>} : vector<16x64xbf16>, vector<64x32xbf16>, vector<16x32xf32> -> vector<16x32xf32>
    %c0_15 = arith.constant 0 : index
    %c0_16 = arith.constant 0 : index
    %20 = vector.load %arg7[%c0_15, %c0_16] : memref<1x32xf32, #tpu.memory_space<vmem>>, vector<1x32xf32>
    %21 = vector.broadcast %20 : vector<1x32xf32> to vector<16x32xf32>
    %22 = arith.addf %19, %21 : vector<16x32xf32>
    %cst_17 = arith.constant 0.000000e+00 : f32
    %23 = vector.broadcast %cst_17 : f32 to vector<16x32xf32>
    %24 = arith.maximumf %22, %23 : vector<16x32xf32>
    %25 = arith.truncf %24 : vector<16x32xf32> to vector<16x32xbf16>
    %c0_18 = arith.constant 0 : index
    %c0_19 = arith.constant 0 : index
    %26 = vector.load %arg8[%c0_18, %c0_19] : memref<32x2xbf16, #tpu.memory_space<vmem>>, vector<32x2xbf16>
    %cst_20 = arith.constant dense<0.000000e+00> : vector<16x2xf32>
    %27 = tpu.matmul %25, %26, %cst_20 {dimension_numbers = #tpu.dot_dimension_numbers<[1], [0], [0], [1], [0, 0, 1, 1], [], []>} : vector<16x32xbf16>, vector<32x2xbf16>, vector<16x2xf32> -> vector<16x2xf32>
    %c0_21 = arith.constant 0 : index
    %c0_22 = arith.constant 0 : index
    %28 = vector.load %arg9[%c0_21, %c0_22] : memref<1x2xf32, #tpu.memory_space<vmem>>, vector<1x2xf32>
    %29 = vector.broadcast %28 : vector<1x2xf32> to vector<16x2xf32>
    %30 = arith.addf %27, %29 : vector<16x2xf32>
    %c0_23 = arith.constant 0 : index
    %c0_24 = arith.constant 0 : index
    %31 = vector.load %arg10[%c0_23, %c0_24] : memref<16x2xf32, #tpu.memory_space<vmem>>, vector<16x2xf32>
    tpu.vector_store %arg10[%c0_23, %c0_24], %30 {strides = array<i32>} : memref<16x2xf32, #tpu.memory_space<vmem>>, vector<16x2xf32>,
    return
  }
  func.func @transform_0(%arg0: i32) -> (i32, i32) {
    %c0_i32 = arith.constant 0 : i32
    %c0_i32_0 = arith.constant 0 : i32
    return %arg0, %c0_i32 : i32, i32
  }
  func.func @transform_1(%arg0: i32) -> (i32, i32) {
    %c0_i32 = arith.constant 0 : i32
    %c0_i32_0 = arith.constant 0 : i32
    %c0_i32_1 = arith.constant 0 : i32
    return %c0_i32, %c0_i32_0 : i32, i32
  }
  func.func @transform_2(%arg0: i32) -> (i32, i32) {
    %c0_i32 = arith.constant 0 : i32
    %c0_i32_0 = arith.constant 0 : i32
    %c0_i32_1 = arith.constant 0 : i32
    return %c0_i32, %c0_i32_0 : i32, i32
  }
  func.func @transform_3(%arg0: i32) -> (i32, i32) {
    %c0_i32 = arith.constant 0 : i32
    %c0_i32_0 = arith.constant 0 : i32
    %c0_i32_1 = arith.constant 0 : i32
    return %c0_i32, %c0_i32_0 : i32, i32
  }
  func.func @transform_4(%arg0: i32) -> (i32, i32) {
    %c0_i32 = arith.constant 0 : i32
    %c0_i32_0 = arith.constant 0 : i32
    %c0_i32_1 = arith.constant 0 : i32
    return %c0_i32, %c0_i32_0 : i32, i32
  }
  func.func @transform_5(%arg0: i32) -> (i32, i32) {
    %c0_i32 = arith.constant 0 : i32
    %c0_i32_0 = arith.constant 0 : i32
    %c0_i32_1 = arith.constant 0 : i32
    return %c0_i32, %c0_i32_0 : i32, i32
  }
  func.func @transform_6(%arg0: i32) -> (i32, i32) {
    %c0_i32 = arith.constant 0 : i32
    %c0_i32_0 = arith.constant 0 : i32
    %c0_i32_1 = arith.constant 0 : i32
    return %c0_i32, %c0_i32_0 : i32, i32
  }
  func.func @transform_7(%arg0: i32) -> (i32, i32) {
    %c0_i32 = arith.constant 0 : i32
    %c0_i32_0 = arith.constant 0 : i32
    %c0_i32_1 = arith.constant 0 : i32
    return %c0_i32, %c0_i32_0 : i32, i32
  }
  func.func @transform_8(%arg0: i32) -> (i32, i32) {
    %c0_i32 = arith.constant 0 : i32
    %c0_i32_0 = arith.constant 0 : i32
    %c0_i32_1 = arith.constant 0 : i32
    return %c0_i32, %c0_i32_0 : i32, i32
  }
  func.func @transform_9(%arg0: i32) -> (i32, i32) {
    %c0_i32 = arith.constant 0 : i32
    %c0_i32_0 = arith.constant 0 : i32
    return %arg0, %c0_i32 : i32, i32
  }
}

</mosaic_0001>

<llo_original>
// kernel: tpu_custom_call.1
$region0: #{tpu_custom_call.1}
  #allocation0 [shape = 'u32[]', space=smem, size = 0x4, offset = 0x4, fixed_abs, tag = 'smem constant byte address 0x4 - core index']
  #allocation1 [shape = 'u32[144,128]{1,0:T(1,128)}', space=vmem, size = 0x12000, scoped, tag = 'internal scratch']
  %s0 = inlined_call_operand.vmem [shape: f32[8,16], index: 0, kind: input, shape index: {}]
  %s1 = inlined_call_operand.vmem [shape: bf16[16,128], index: 1, kind: input, shape index: {}]
  %s2 = inlined_call_operand.vmem [shape: f32[1,128], index: 2, kind: input, shape index: {}]
  %s3 = inlined_call_operand.vmem [shape: bf16[128,64], index: 3, kind: input, shape index: {}]
  %s4 = inlined_call_operand.vmem [shape: f32[1,64], index: 4, kind: input, shape index: {}]
  %s5 = inlined_call_operand.vmem [shape: bf16[64,32], index: 5, kind: input, shape index: {}]
  %s6 = inlined_call_operand.vmem [shape: f32[1,32], index: 6, kind: input, shape index: {}]
  %s7 = inlined_call_operand.vmem [shape: bf16[32,2], index: 7, kind: input, shape index: {}]
  %s8 = inlined_call_operand.vmem [shape: f32[1,2], index: 8, kind: input, shape index: {}]
  %s9 = inlined_call_operand.vmem [shape: f32[8,2], index: 9, kind: output, shape index: {}]
  %s10 = sld [smem:[#allocation0]]
  $region80: #{tpu_custom_call.1} parent=0
    _
  %s12 = ssub.s32 1, %s10
  %s13 = scalar_select 0, %s12, %s10
  $region1: #{tpu_custom_call.1} parent=0
    #allocation2 [shape = 'u8[8192]{0}', space=vmem, size = 0x2000, scoped, tag = 'output window, operand 0, single buffered']
    // Predicated region
    $region2: #{tpu_custom_call.1} parent=1 // pred_check
      _
    $region3: #{tpu_custom_call.1} parent=1 // pred_check_branch
      %15 = sbr.rel (0) target = $region5
    $region4: #{tpu_custom_call.1} parent=1 // pred_region
      _
    $region5: #{tpu_custom_call.1} parent=1 // pred_fallthru
      _
    // Predicated region
    $region6: #{tpu_custom_call.1} parent=1 // pred_check
      _
    $region7: #{tpu_custom_call.1} parent=1 // pred_check_branch
      %17 = sbr.rel (0) target = $region9
    $region8: #{tpu_custom_call.1} parent=1 // pred_region
      _
    $region9: #{tpu_custom_call.1} parent=1 // pred_fallthru
      _
    // Predicated region
    $region10: #{tpu_custom_call.1} parent=1 // pred_check
      _
    $region11: #{tpu_custom_call.1} parent=1 // pred_check_branch
      %19 = sbr.rel (0) target = $region13
    $region12: #{tpu_custom_call.1} parent=1 // pred_region
      _
    $region13: #{tpu_custom_call.1} parent=1 // pred_fallthru
      _
    // Predicated region
    $region14: #{tpu_custom_call.1} parent=1 // pred_check
      _
    $region15: #{tpu_custom_call.1} parent=1 // pred_check_branch
      %21 = sbr.rel (0) target = $region17
    $region16: #{tpu_custom_call.1} parent=1 // pred_region
      _
    $region17: #{tpu_custom_call.1} parent=1 // pred_fallthru
      _
    // Predicated region
    $region18: #{tpu_custom_call.1} parent=1 // pred_check
      _
    $region19: #{tpu_custom_call.1} parent=1 // pred_check_branch
      %23 = sbr.rel (0) target = $region21
    $region20: #{tpu_custom_call.1} parent=1 // pred_region
      _
    $region21: #{tpu_custom_call.1} parent=1 // pred_fallthru
      _
    // Predicated region
    $region22: #{tpu_custom_call.1} parent=1 // pred_check
      _
    $region23: #{tpu_custom_call.1} parent=1 // pred_check_branch
      %25 = sbr.rel (0) target = $region25
    $region24: #{tpu_custom_call.1} parent=1 // pred_region
      _
    $region25: #{tpu_custom_call.1} parent=1 // pred_fallthru
      _
    // Predicated region
    $region26: #{tpu_custom_call.1} parent=1 // pred_check
      _
    $region27: #{tpu_custom_call.1} parent=1 // pred_check_branch
      %27 = sbr.rel (0) target = $region29
    $region28: #{tpu_custom_call.1} parent=1 // pred_region
      _
    $region29: #{tpu_custom_call.1} parent=1 // pred_fallthru
      _
    // Predicated region
    $region30: #{tpu_custom_call.1} parent=1 // pred_check
      _
    $region31: #{tpu_custom_call.1} parent=1 // pred_check_branch
      %29 = sbr.rel (0) target = $region33
    $region32: #{tpu_custom_call.1} parent=1 // pred_region
      _
    $region33: #{tpu_custom_call.1} parent=1 // pred_fallthru
      _
    // Predicated region
    $region34: #{tpu_custom_call.1} parent=1 // pred_check
      _
    $region35: #{tpu_custom_call.1} parent=1 // pred_check_branch
      %31 = sbr.rel (0) target = $region37
    $region36: #{tpu_custom_call.1} parent=1 // pred_region
      _
    $region37: #{tpu_custom_call.1} parent=1 // pred_fallthru
      _
    %v33 = vld [vmem:[%s0] sm:$0xff]
    %v34 = vld [vmem:[%s0 + $0x8] sm:$0xff]
    %v35 = vpack.c.bf16 %v34, %v33
    %v36 = vld [vmem:[%s1] sm:$0xf]
    %v37 = vld [vmem:[%s1 + $0x4] sm:$0xf]
    %v38 = vld [vmem:[%s2] sm:$0x1]
    %v40 = vlaneseq
    %v41 = vshrl.u32 %v40, 7
    %v42 = vsub.s32 0, %v41
    %v43 = vrot.slane %v38, %v42
    %v47 = vunpack.c.l.b16 %v36
    %v48 = vunpack.c.l.b16 %v37
    %v49 = vpack.c.b16 %v48, %v47
    %vm51 = vcmask 130048
    %v53 = vsel %vm51, %v35, 0
    %55 = vmatprep.subr.bf16.mxu0 0
    %56 = vmatpush1.bf16.msra.mxu0 %v49
    %57 = vmatprep.subr.bf16.mxu0 0
    %58 = vmatpush1.bf16.msra.mxu0 0
    %59 = vmatprep.subr.bf16.mxu0 0
    %60 = vmatpush1.bf16.msra.mxu0 0
    %61 = vmatprep.subr.bf16.mxu0 0
    %62 = vmatpush1.bf16.msra.mxu0 0
    %63 = vmatprep.subr.bf16.mxu0 0
    %64 = vmatpush1.bf16.msra.mxu0 0
    %65 = vmatprep.subr.bf16.mxu0 0
    %66 = vmatpush1.bf16.msra.mxu0 0
    %67 = vmatprep.subr.bf16.mxu0 0
    %68 = vmatpush1.bf16.msra.mxu0 0
    %69 = vmatprep.subr.bf16.mxu0 0
    %70 = vmatpush1.bf16.msra.mxu0 0
    %71 = vmatprep.subr.bf16.mxu0 0
    %72 = vmatpush1.bf16.msra.mxu0 0
    %73 = vmatprep.subr.bf16.mxu0 0
    %74 = vmatpush1.bf16.msra.mxu0 0
    %75 = vmatprep.subr.bf16.mxu0 0
    %76 = vmatpush1.bf16.msra.mxu0 0
    %77 = vmatprep.subr.bf16.mxu0 0
    %78 = vmatpush1.bf16.msra.mxu0 0
    %79 = vmatprep.subr.bf16.mxu0 0
    %80 = vmatpush1.bf16.msra.mxu0 0
    %81 = vmatprep.subr.bf16.mxu0 0
    %82 = vmatpush1.bf16.msra.mxu0 0
    %83 = vmatprep.subr.bf16.mxu0 0
    %84 = vmatpush1.bf16.msra.mxu0 0
    %85 = vmatprep.subr.bf16.mxu0 0
    %86 = vmatpush1.bf16.msra.mxu0 0
    %87 = vmatprep.mubr.bf16.mxu0 0
    %88 = vmatmul.mubr.bf16.gmra.mrb[0].mxu0 %v53
    %v89 = vpop.f32.mrb[0].mxu0
    %v90 = vadd.f32 %v43, %v89
    %v91 = vpop.f32.mrb[0].mxu0
    %v92 = vpop.f32.mrb[0].mxu0
    %v93 = vadd.f32 %v43, %v92
    %v94 = vpop.f32.mrb[0].mxu0
    %95 = vdwg.mxu0
    %v96 = vmax.f32 %v90, 0.0
    %v97 = vmax.f32 %v93, 0.0
    %v98 = vpack.c.bf16 %v97, %v96
    %v99 = vld [vmem:[%s3] sm:$0xf]
    %v100 = vld [vmem:[%s3 + $0x4] sm:$0xf]
    %v101 = vld [vmem:[%s3 + $0x8] sm:$0xf]
    %v102 = vld [vmem:[%s3 + $0xc] sm:$0xf]
    %v103 = vld [vmem:[%s3 + $0x10] sm:$0xf]
    %v104 = vld [vmem:[%s3 + $0x14] sm:$0xf]
    %v105 = vld [vmem:[%s3 + $0x18] sm:$0xf]
    %v106 = vld [vmem:[%s3 + $0x1c] sm:$0xf]
    %v107 = vld [vmem:[%s3 + $0x20] sm:$0xf]
    %v108 = vld [vmem:[%s3 + $0x24] sm:$0xf]
    %v109 = vld [vmem:[%s3 + $0x28] sm:$0xf]
    %v110 = vld [vmem:[%s3 + $0x2c] sm:$0xf]
    %v111 = vld [vmem:[%s3 + $0x30] sm:$0xf]
    %v112 = vld [vmem:[%s3 + $0x34] sm:$0xf]
    %v113 = vld [vmem:[%s3 + $0x38] sm:$0xf]
    %v114 = vld [vmem:[%s3 + $0x3c] sm:$0xf]
    %v115 = vld [vmem:[%s4] sm:$0x1]
    %v117 = vlaneseq
    %v118 = vshrl.u32 %v117, 7
    %v119 = vsub.s32 0, %v118
    %v120 = vrot.slane %v115, %v119
    %v138 = vunpack.c.l.b16 %v99
    %v139 = vunpack.c.l.b16 %v100
    %v140 = vunpack.c.l.b16 %v101
    %v141 = vunpack.c.l.b16 %v102
    %v142 = vunpack.c.l.b16 %v103
    %v143 = vunpack.c.l.b16 %v104
    %v144 = vunpack.c.l.b16 %v105
    %v145 = vunpack.c.l.b16 %v106
    %v146 = vunpack.c.l.b16 %v107
    %v147 = vunpack.c.l.b16 %v108
    %v148 = vunpack.c.l.b16 %v109
    %v149 = vunpack.c.l.b16 %v110
    %v150 = vunpack.c.l.b16 %v111
    %v151 = vunpack.c.l.b16 %v112
    %v152 = vunpack.c.l.b16 %v113
    %v153 = vunpack.c.l.b16 %v114
    %v154 = vpack.c.b16 %v139, %v138
    %v155 = vpack.c.b16 %v141, %v140
    %v156 = vpack.c.b16 %v143, %v142
    %v157 = vpack.c.b16 %v145, %v144
    %v158 = vpack.c.b16 %v147, %v146
    %v159 = vpack.c.b16 %v149, %v148
    %v160 = vpack.c.b16 %v151, %v150
    %v161 = vpack.c.b16 %v153, %v152
    %170 = vmatprep.subr.bf16.mxu0 0
    %171 = vmatpush1.bf16.msra.mxu0 %v154
    %172 = vmatprep.subr.bf16.mxu0 0
    %173 = vmatpush1.bf16.msra.mxu0 %v155
    %174 = vmatprep.subr.bf16.mxu0 0
    %175 = vmatpush1.bf16.msra.mxu0 %v156
    %176 = vmatprep.subr.bf16.mxu0 0
    %177 = vmatpush1.bf16.msra.mxu0 %v157
    %178 = vmatprep.subr.bf16.mxu0 0
    %179 = vmatpush1.bf16.msra.mxu0 %v158
    %180 = vmatprep.subr.bf16.mxu0 0
    %181 = vmatpush1.bf16.msra.mxu0 %v159
    %182 = vmatprep.subr.bf16.mxu0 0
    %183 = vmatpush1.bf16.msra.mxu0 %v160
    %184 = vmatprep.subr.bf16.mxu0 0
    %185 = vmatpush1.bf16.msra.mxu0 %v161
    %186 = vmatprep.subr.bf16.mxu0 0
    %187 = vmatpush1.bf16.msra.mxu0 0
    %188 = vmatprep.subr.bf16.mxu0 0
    %189 = vmatpush1.bf16.msra.mxu0 0
    %190 = vmatprep.subr.bf16.mxu0 0
    %191 = vmatpush1.bf16.msra.mxu0 0
    %192 = vmatprep.subr.bf16.mxu0 0
    %193 = vmatpush1.bf16.msra.mxu0 0
    %194 = vmatprep.subr.bf16.mxu0 0
    %195 = vmatpush1.bf16.msra.mxu0 0
    %196 = vmatprep.subr.bf16.mxu0 0
    %197 = vmatpush1.bf16.msra.mxu0 0
    %198 = vmatprep.subr.bf16.mxu0 0
    %199 = vmatpush1.bf16.msra.mxu0 0
    %200 = vmatprep.subr.bf16.mxu0 0
    %201 = vmatpush1.bf16.msra.mxu0 0
    %202 = vmatprep.mubr.bf16.mxu0 0
    %203 = vmatmul.mubr.bf16.gmra.mrb[0].mxu0 %v98
    %v204 = vpop.f32.mrb[0].mxu0
    %v205 = vadd.f32 %v120, %v204
    %v206 = vpop.f32.mrb[0].mxu0
    %v207 = vpop.f32.mrb[0].mxu0
    %v208 = vadd.f32 %v120, %v207
    %v209 = vpop.f32.mrb[0].mxu0
    %210 = vdwg.mxu0
    %v211 = vmax.f32 %v205, 0.0
    %v212 = vmax.f32 %v208, 0.0
    %v213 = vpack.c.bf16 %v212, %v211
    %v214 = vld [vmem:[%s5] sm:$0xf]
    %v215 = vld [vmem:[%s5 + $0x4] sm:$0xf]
    %v216 = vld [vmem:[%s5 + $0x8] sm:$0xf]
    %v217 = vld [vmem:[%s5 + $0xc] sm:$0xf]
    %v218 = vld [vmem:[%s5 + $0x10] sm:$0xf]
    %v219 = vld [vmem:[%s5 + $0x14] sm:$0xf]
    %v220 = vld [vmem:[%s5 + $0x18] sm:$0xf]
    %v221 = vld [vmem:[%s5 + $0x1c] sm:$0xf]
    %v222 = vld [vmem:[%s6] sm:$0x1]
    %v224 = vlaneseq
    %v225 = vshrl.u32 %v224, 7
    %v226 = vsub.s32 0, %v225
    %v227 = vrot.slane %v222, %v226
    %v237 = vunpack.c.l.b16 %v214
    %v238 = vunpack.c.l.b16 %v215
    %v239 = vunpack.c.l.b16 %v216
    %v240 = vunpack.c.l.b16 %v217
    %v241 = vunpack.c.l.b16 %v218
    %v242 = vunpack.c.l.b16 %v219
    %v243 = vunpack.c.l.b16 %v220
    %v244 = vunpack.c.l.b16 %v221
    %v245 = vpack.c.b16 %v238, %v237
    %v246 = vpack.c.b16 %v240, %v239
    %v247 = vpack.c.b16 %v242, %v241
    %v248 = vpack.c.b16 %v244, %v243
    %vm253 = vcmask 523264
    %v255 = vsel %vm253, %v213, 0
    %257 = vmatprep.subr.bf16.mxu0 0
    %258 = vmatpush1.bf16.msra.mxu0 %v245
    %259 = vmatprep.subr.bf16.mxu0 0
    %260 = vmatpush1.bf16.msra.mxu0 %v246
    %261 = vmatprep.subr.bf16.mxu0 0
    %262 = vmatpush1.bf16.msra.mxu0 %v247
    %263 = vmatprep.subr.bf16.mxu0 0
    %264 = vmatpush1.bf16.msra.mxu0 %v248
    %265 = vmatprep.subr.bf16.mxu0 0
    %266 = vmatpush1.bf16.msra.mxu0 0
    %267 = vmatprep.subr.bf16.mxu0 0
    %268 = vmatpush1.bf16.msra.mxu0 0
    %269 = vmatprep.subr.bf16.mxu0 0
    %270 = vmatpush1.bf16.msra.mxu0 0
    %271 = vmatprep.subr.bf16.mxu0 0
    %272 = vmatpush1.bf16.msra.mxu0 0
    %273 = vmatprep.subr.bf16.mxu0 0
    %274 = vmatpush1.bf16.msra.mxu0 0
    %275 = vmatprep.subr.bf16.mxu0 0
    %276 = vmatpush1.bf16.msra.mxu0 0
    %277 = vmatprep.subr.bf16.mxu0 0
    %278 = vmatpush1.bf16.msra.mxu0 0
    %279 = vmatprep.subr.bf16.mxu0 0
    %280 = vmatpush1.bf16.msra.mxu0 0
    %281 = vmatprep.subr.bf16.mxu0 0
    %282 = vmatpush1.bf16.msra.mxu0 0
    %283 = vmatprep.subr.bf16.mxu0 0
    %284 = vmatpush1.bf16.msra.mxu0 0
    %285 = vmatprep.subr.bf16.mxu0 0
    %286 = vmatpush1.bf16.msra.mxu0 0
    %287 = vmatprep.subr.bf16.mxu0 0
    %288 = vmatpush1.bf16.msra.mxu0 0
    %289 = vmatprep.mubr.bf16.mxu0 0
    %290 = vmatmul.mubr.bf16.gmra.mrb[0].mxu0 %v255
    %v291 = vpop.f32.mrb[0].mxu0
    %v292 = vadd.f32 %v227, %v291
    %v293 = vpop.f32.mrb[0].mxu0
    %v294 = vpop.f32.mrb[0].mxu0
    %v295 = vadd.f32 %v227, %v294
    %v296 = vpop.f32.mrb[0].mxu0
    %297 = vdwg.mxu0
    %v298 = vmax.f32 %v292, 0.0
    %v299 = vmax.f32 %v295, 0.0
    %v300 = vpack.c.bf16 %v299, %v298
    %v301 = vld [vmem:[%s7] sm:$0xf]
    %v302 = vld [vmem:[%s7 + $0x4] sm:$0xf]
    %v303 = vld [vmem:[%s7 + $0x8] sm:$0xf]
    %v304 = vld [vmem:[%s7 + $0xc] sm:$0xf]
    %v305 = vld [vmem:[%s8] sm:$0x1]
    %v307 = vlaneseq
    %v308 = vshrl.u32 %v307, 7
    %v309 = vsub.s32 0, %v308
    %v310 = vrot.slane %v305, %v309
    %v316 = vunpack.c.l.b16 %v301
    %v317 = vunpack.c.l.b16 %v302
    %v318 = vunpack.c.l.b16 %v303
    %v319 = vunpack.c.l.b16 %v304
    %v320 = vpack.c.b16 %v317, %v316
    %v321 = vpack.c.b16 %v319, %v318
    %vm324 = vcmask 261120
    %v326 = vsel %vm324, %v300, 0
    %328 = vmatprep.subr.bf16.mxu0 0
    %329 = vmatpush1.bf16.msra.mxu0 %v320
    %330 = vmatprep.subr.bf16.mxu0 0
    %331 = vmatpush1.bf16.msra.mxu0 %v321
    %332 = vmatprep.subr.bf16.mxu0 0
    %333 = vmatpush1.bf16.msra.mxu0 0
    %334 = vmatprep.subr.bf16.mxu0 0
    %335 = vmatpush1.bf16.msra.mxu0 0
    %336 = vmatprep.subr.bf16.mxu0 0
    %337 = vmatpush1.bf16.msra.mxu0 0
    %338 = vmatprep.subr.bf16.mxu0 0
    %339 = vmatpush1.bf16.msra.mxu0 0
    %340 = vmatprep.subr.bf16.mxu0 0
    %341 = vmatpush1.bf16.msra.mxu0 0
    %342 = vmatprep.subr.bf16.mxu0 0
    %343 = vmatpush1.bf16.msra.mxu0 0
    %344 = vmatprep.subr.bf16.mxu0 0
    %345 = vmatpush1.bf16.msra.mxu0 0
    %346 = vmatprep.subr.bf16.mxu0 0
    %347 = vmatpush1.bf16.msra.mxu0 0
    %348 = vmatprep.subr.bf16.mxu0 0
    %349 = vmatpush1.bf16.msra.mxu0 0
    %350 = vmatprep.subr.bf16.mxu0 0
    %351 = vmatpush1.bf16.msra.mxu0 0
    %352 = vmatprep.subr.bf16.mxu0 0
    %353 = vmatpush1.bf16.msra.mxu0 0
    %354 = vmatprep.subr.bf16.mxu0 0
    %355 = vmatpush1.bf16.msra.mxu0 0
    %356 = vmatprep.subr.bf16.mxu0 0
    %357 = vmatpush1.bf16.msra.mxu0 0
    %358 = vmatprep.subr.bf16.mxu0 0
    %359 = vmatpush1.bf16.msra.mxu0 0
    %360 = vmatprep.mubr.bf16.mxu0 0
    %361 = vmatmul.mubr.bf16.gmra.mrb[0].mxu0 %v326
    %v362 = vpop.f32.mrb[0].mxu0
    %v363 = vadd.f32 %v310, %v362
    %v364 = vpop.f32.mrb[0].mxu0
    %v365 = vpop.f32.mrb[0].mxu0
    %v366 = vadd.f32 %v310, %v365
    %v367 = vpop.f32.mrb[0].mxu0
    %368 = vdwg.mxu0
    %vm369 = vcmask 15360
    %370 = vst.msk [vmem:[#allocation2] sm:$0xff] %vm369, %v363
    %371 = vst.msk [vmem:[#allocation2 + $0x8] sm:$0xff] %vm369, %v366
    // Predicated region
    $region38: #{tpu_custom_call.1} parent=1 // pred_check
      _
    $region39: #{tpu_custom_call.1} parent=1 // pred_check_branch
      %373 = sbr.rel (0) target = $region41
    $region40: #{tpu_custom_call.1} parent=1 // pred_region
      // Predicated region
      $region42: #{tpu_custom_call.1} parent=40 // pred_check
        _
      $region43: #{tpu_custom_call.1} parent=40 // pred_check_branch
        %375 = sbr.rel (0) target = $region45
      $region44: #{tpu_custom_call.1} parent=40 // pred_region
        // Predicated region
        $region46: #{tpu_custom_call.1} parent=44 // pred_check
          _
        $region47: #{tpu_custom_call.1} parent=44 // pred_check_branch
          %377 = sbr.rel (0) target = $region49
        $region48: #{tpu_custom_call.1} parent=44 // pred_region
          // Predicated region
          $region61: #{tpu_custom_call.1} parent=48 // pred_check
            _
          $region62: #{tpu_custom_call.1} parent=48 // pred_check_branch
            %392 = sbr.rel (0) target = $region64
          $region63: #{tpu_custom_call.1} parent=48 // pred_region
            loop: start=0, step=1, limit=1
            $region65: #{tpu_custom_call.1} parent=63 // loop_pre_header
              _
            $region66: #{tpu_custom_call.1} parent=63 // loop_header
              %s394 = sphi 0, %s398
              %p395 = scmp.ge.s32.totalorder %s394, 1
              %s399 = sphi [#allocation2], [#allocation2]
              %s400 = sphi %s9, %s9
            $region67: #{tpu_custom_call.1} parent=63 // loop_header_branch
              %397 = sbr.rel (%p395) target = $region71
            $region68: #{tpu_custom_call.1} parent=63 // loop_body
              %v401 = vld [vmem:[%s399] sm:$0xff]
              %402 = vst [vmem:[%s400] sm:$0xff] %v401
            $region69: #{tpu_custom_call.1} parent=63 // loop_footer
              %s398 = sadd.s32 1, %s394
            $region70: #{tpu_custom_call.1} parent=63 // loop_footer_branch
              %393 = sbr.rel target = $region66
            $region71: #{tpu_custom_call.1} parent=63 // loop_exit
              _
          $region64: #{tpu_custom_call.1} parent=48 // pred_fallthru
            _
          // Predicated region
          $region72: #{tpu_custom_call.1} parent=48 // pred_check
            _
          $region73: #{tpu_custom_call.1} parent=48 // pred_check_branch
            %404 = sbr.rel target = $region75
          $region74: #{tpu_custom_call.1} parent=48 // pred_region
            _
          $region75: #{tpu_custom_call.1} parent=48 // pred_fallthru
            _
        $region49: #{tpu_custom_call.1} parent=44 // pred_fallthru
          _
        // Predicated region
        $region50: #{tpu_custom_call.1} parent=44 // pred_check
          _
        $region51: #{tpu_custom_call.1} parent=44 // pred_check_branch
          %379 = sbr.rel target = $region53
        $region52: #{tpu_custom_call.1} parent=44 // pred_region
          loop: start=0, step=1, limit=1
          $region54: #{tpu_custom_call.1} parent=52 // loop_pre_header
            _
          $region55: #{tpu_custom_call.1} parent=52 // loop_header
            %s382 = sphi 0, %s386
            %p383 = scmp.ge.s32.totalorder %s382, 1
            %s387 = sphi [#allocation2], [#allocation2]
            %s388 = sphi %s9, %s9
          $region56: #{tpu_custom_call.1} parent=52 // loop_header_branch
            %385 = sbr.rel (%p383) target = $region60
          $region57: #{tpu_custom_call.1} parent=52 // loop_body
            %v389 = vld [vmem:[%s387] sm:$0xff]
            %390 = vst [vmem:[%s388] sm:$0xff] %v389
          $region58: #{tpu_custom_call.1} parent=52 // loop_footer
            %s386 = sadd.s32 1, %s382
          $region59: #{tpu_custom_call.1} parent=52 // loop_footer_branch
            %381 = sbr.rel target = $region55
          $region60: #{tpu_custom_call.1} parent=52 // loop_exit
            _
        $region53: #{tpu_custom_call.1} parent=44 // pred_fallthru
          _
      $region45: #{tpu_custom_call.1} parent=40 // pred_fallthru
        _
      %405 = vnop
    $region41: #{tpu_custom_call.1} parent=1 // pred_fallthru
      _
    // Predicated region
    $region76: #{tpu_custom_call.1} parent=1 // pred_check
      _
    $region77: #{tpu_custom_call.1} parent=1 // pred_check_branch
      %407 = sbr.rel (0) target = $region79
    $region78: #{tpu_custom_call.1} parent=1 // pred_region
      _
    $region79: #{tpu_custom_call.1} parent=1 // pred_fallthru
      _

</llo_original>
